<compile_context>
chip_gen: v7x
topology: tpu7x:2x2x1
jax: 0.10.0
libtpu: 0.0.40
codegen_flags: <defaults>
</compile_context>

<pallas_src>
import functools

import jax
import jax.numpy as jnp
import numpy as np
from jax.experimental import pallas as pl
from jax.experimental.pallas import tpu as pltpu

_LANE = 128                              # TPU lane width
_SUB = 8                                 # f32 sublane tile
_MAX_COL_TILE = 4096                     # lane-dim tile cap (elements)
_TARGET_BLOCK_BYTES = 4 * 1024 * 1024    # ~4 MiB per input block
_VMEM_LIMIT = 32 * 1024 * 1024           # in+out double-buffered ~16 MiB << 32 MiB


# ---------------------------------------------------------------------------
# host-side (trace-time) shape helpers -- reshapes only, never pads / copies
# ---------------------------------------------------------------------------
def _sublane(itemsize):
    # packed sub-32-bit dtypes need sublane tiles of 16 (bf16) / 32 (int8)
    return max(_SUB, 32 // max(1, itemsize))


def _pick_tiles(nrows, ncols, itemsize):
    """(sublane_tile, lane_tile) for a 2-D view, ~_TARGET_BLOCK_BYTES/block."""
    sub = _sublane(itemsize)
    lt = ncols if ncols <= _MAX_COL_TILE else _MAX_COL_TILE   # full dim or 128-mult
    rows = max(sub, _TARGET_BLOCK_BYTES // max(1, lt * itemsize))
    st = nrows if nrows <= rows else max(sub, (rows // sub) * sub)
    return st, lt


def _per_tensor_view(x):
    """Free (pure reshape) lane-dense 2-D view of a tensor for per-tensor ops."""
    if x.ndim == 0:
        return x.reshape(1, 1)
    N = x.size
    for W in (_MAX_COL_TILE, 2048, 1024, 512, 256, _LANE):
        if N % W == 0:
            return x.reshape(N // W, W)
    # numel not a multiple of 128: group trailing dims (still a free reshape);
    # the kernels mask / discard the ragged lane tail in-kernel.
    shape = x.shape
    M, k = 1, len(shape)
    while k > 0 and M * shape[k - 1] <= _MAX_COL_TILE:
        M *= shape[k - 1]
        k -= 1
    if M == 1:                       # single huge, non-128-multiple trailing dim
        M = shape[-1]
    return x.reshape(N // M, M)


def _channel_split(shape, ch_axis):
    """(P, C, Q) sizes of the free (pre, channel, post) view of `shape`."""
    axis = ch_axis % len(shape)
    P = int(np.prod(shape[:axis], dtype=np.int64)) if axis > 0 else 1
    C = int(shape[axis])
    Q = int(np.prod(shape[axis + 1:], dtype=np.int64)) if axis < len(shape) - 1 else 1
    return P, C, Q


def _compiler_params(semantics):
    return pltpu.CompilerParams(dimension_semantics=semantics,
                                vmem_limit_bytes=_VMEM_LIMIT)


# ---------------------------------------------------------------------------
# Pallas kernels
# ---------------------------------------------------------------------------
def _fq_affine_kernel(x_ref, s_ref, inv_ref, lo_ref, hi_ref, o_ref):
    # s/inv/lo/hi blocks broadcast against the x block: (cb, 1) when the
    # channel lives on sublanes, (1, cb) when it lives on lanes.
    x = x_ref[...].astype(jnp.float32)
    q = jnp.clip(jnp.round(x * inv_ref[...]), lo_ref[...], hi_ref[...])
    o_ref[...] = (s_ref[...] * q).astype(o_ref.dtype)


def _fq_scalar_kernel(p_ref, x_ref, o_ref):
    # p_ref (SMEM, f32[4]): [scale, 1/scale, qmin - zp, qmax - zp]
    x = x_ref[...].astype(jnp.float32)
    q = jnp.clip(jnp.round(x * p_ref[1]), p_ref[2], p_ref[3])
    o_ref[...] = (p_ref[0] * q).astype(o_ref.dtype)


def _minmax_rows_kernel(x_ref, mn_ref, mx_ref, *, ct, M):
    """Per-row min/max of a (R, M) view; grid = (row blocks, col blocks)."""
    j = pl.program_id(1)
    x = x_ref[...].astype(jnp.float32)
    if M % ct:  # static: mask the ragged lane tail of the last column block
        col = jax.lax.broadcasted_iota(jnp.int32, x.shape, 1) + j * ct
        xm = jnp.min(jnp.where(col < M, x, jnp.inf), axis=1, keepdims=True)
        xM = jnp.max(jnp.where(col < M, x, -jnp.inf), axis=1, keepdims=True)
    else:
        xm = jnp.min(x, axis=1, keepdims=True)
        xM = jnp.max(x, axis=1, keepdims=True)

    @pl.when(j == 0)
    def _():
        mn_ref[...] = xm
        mx_ref[...] = xM

    @pl.when(j != 0)
    def _():
        mn_ref[...] = jnp.minimum(mn_ref[...], xm)
        mx_ref[...] = jnp.maximum(mx_ref[...], xM)


def _minmax_chan_sub_kernel(x_ref, mn_ref, mx_ref, *, qb, Q):
    """Per-channel min/max, channel on sublanes; grid = (C blocks, P, Q blocks)."""
    p = pl.program_id(1)
    q = pl.program_id(2)
    x = x_ref[...].astype(jnp.float32)                  # (cb, qb)
    if Q % qb:
        col = jax.lax.broadcasted_iota(jnp.int32, x.shape, 1) + q * qb
        xm = jnp.min(jnp.where(col < Q, x, jnp.inf), axis=1, keepdims=True)
        xM = jnp.max(jnp.where(col < Q, x, -jnp.inf), axis=1, keepdims=True)
    else:
        xm = jnp.min(x, axis=1, keepdims=True)
        xM = jnp.max(x, axis=1, keepdims=True)
    first = jnp.logical_and(p == 0, q == 0)

    @pl.when(first)
    def _():
        mn_ref[...] = xm
        mx_ref[...] = xM

    @pl.when(jnp.logical_not(first))
    def _():
        mn_ref[...] = jnp.minimum(mn_ref[...], xm)
        mx_ref[...] = jnp.maximum(mx_ref[...], xM)


def _minmax_chan_lane_kernel(x_ref, mn_ref, mx_ref, *, pt, P):
    """Per-channel min/max, channel on lanes; grid = (C blocks, P blocks)."""
    i = pl.program_id(1)
    x = x_ref[...].astype(jnp.float32)                  # (pt, cb)
    if P % pt:
        row = jax.lax.broadcasted_iota(jnp.int32, x.shape, 0) + i * pt
        xm = jnp.min(jnp.where(row < P, x, jnp.inf), axis=0, keepdims=True)
        xM = jnp.max(jnp.where(row < P, x, -jnp.inf), axis=0, keepdims=True)
    else:
        xm = jnp.min(x, axis=0, keepdims=True)
        xM = jnp.max(x, axis=0, keepdims=True)

    @pl.when(i == 0)
    def _():
        mn_ref[...] = xm
        mx_ref[...] = xM

    @pl.when(i != 0)
    def _():
        mn_ref[...] = jnp.minimum(mn_ref[...], xm)
        mx_ref[...] = jnp.maximum(mx_ref[...], xM)


# ---------------------------------------------------------------------------
# pallas_call wrappers (all views are pure reshapes of the original tensor)
# ---------------------------------------------------------------------------
def minmax_per_tensor(x):
    x2d = _per_tensor_view(x)
    R, M = x2d.shape
    itemsize = x2d.dtype.itemsize
    rt, ct = _pick_tiles(R, M, itemsize)
    sub = _sublane(itemsize)
    # keep >= 2 blocks on the parallel (row) axis so both v7x TCs get work
    if rt == R and R >= 2 * sub:
        rt = max(sub, ((R + 1) // 2 // sub) * sub)
    grid = (pl.cdiv(R, rt), pl.cdiv(M, ct))
    mn, mx = pl.pallas_call(
        functools.partial(_minmax_rows_kernel, ct=ct, M=M),
        out_shape=(jax.ShapeDtypeStruct((R, 1), jnp.float32),) * 2,
        grid=grid,
        in_specs=[pl.BlockSpec((rt, ct), lambda i, j: (i, j))],
        out_specs=(pl.BlockSpec((rt, 1), lambda i, j: (i, 0)),) * 2,
        compiler_params=_compiler_params(("parallel", "arbitrary")),
    )(x2d)
    return jnp.min(mn), jnp.max(mx)          # tiny (R, 1) partial reduce in XLA


def minmax_per_channel(x, ch_axis):
    P, C, Q = _channel_split(x.shape, ch_axis)
    itemsize = x.dtype.itemsize
    if Q == 1:
        # channel is (effectively) the last axis: channels on lanes,
        # reduce over the P rows in front of it.
        x2d = x.reshape(P, C)
        pt, cb = _pick_tiles(P, C, itemsize)
        grid = (pl.cdiv(C, cb), pl.cdiv(P, pt))
        mn, mx = pl.pallas_call(
            functools.partial(_minmax_chan_lane_kernel, pt=pt, P=P),
            out_shape=(jax.ShapeDtypeStruct((1, C), jnp.float32),) * 2,
            grid=grid,
            in_specs=[pl.BlockSpec((pt, cb), lambda c, i: (i, c))],
            out_specs=(pl.BlockSpec((1, cb), lambda c, i: (0, c)),) * 2,
            compiler_params=_compiler_params(("parallel", "arbitrary")),
        )(x2d)
        return mn[0], mx[0]
    # general case: channels on sublanes, reduce over P (grid axis) and Q (lanes)
    x3d = x.reshape(P, C, Q)
    cb, qb = _pick_tiles(C, Q, itemsize)
    grid = (pl.cdiv(C, cb), P, pl.cdiv(Q, qb))
    mn, mx = pl.pallas_call(
        functools.partial(_minmax_chan_sub_kernel, qb=qb, Q=Q),
        out_shape=(jax.ShapeDtypeStruct((C, 1), jnp.float32),) * 2,
        grid=grid,
        in_specs=[pl.BlockSpec((None, cb, qb), lambda c, p, q: (p, c, q))],
        out_specs=(pl.BlockSpec((cb, 1), lambda c, p, q: (c, 0)),) * 2,
        compiler_params=_compiler_params(("parallel", "arbitrary", "arbitrary")),
    )(x3d)
    return mn[:, 0], mx[:, 0]


def fakequant_per_tensor(x, scale, zero_point, quant_min, quant_max):
    x2d = _per_tensor_view(x)
    R, M = x2d.shape
    rt, ct = _pick_tiles(R, M, x2d.dtype.itemsize)
    grid = (pl.cdiv(R, rt), pl.cdiv(M, ct))
    s = jnp.asarray(scale, jnp.float32).reshape(())
    z = jnp.asarray(zero_point, jnp.float32).reshape(())
    # scale / inv_scale / zero-point-folded clip bounds, computed once (O(1))
    params = jnp.stack([s, 1.0 / s, quant_min - z, quant_max - z])
    y2d = pl.pallas_call(
        _fq_scalar_kernel,
        out_shape=jax.ShapeDtypeStruct((R, M), x2d.dtype),
        grid=grid,
        in_specs=[pl.BlockSpec(memory_space=pltpu.MemorySpace.SMEM),
                  pl.BlockSpec((rt, ct), lambda i, j: (i, j))],
        out_specs=pl.BlockSpec((rt, ct), lambda i, j: (i, j)),
        compiler_params=_compiler_params(("parallel", "parallel")),
    )(params, x2d)
    return y2d.reshape(x.shape)


def fakequant_per_channel(x, scale, zero_point, ch_axis, quant_min, quant_max):
    P, C, Q = _channel_split(x.shape, ch_axis)
    itemsize = x.dtype.itemsize
    s = jnp.broadcast_to(jnp.asarray(scale, jnp.float32).reshape(-1), (C,))
    z = jnp.broadcast_to(jnp.asarray(zero_point, jnp.float32).reshape(-1), (C,))
    inv = 1.0 / s                           # hoisted out of the kernel (O(C))
    lo = quant_min - z                      # zero-point folded clip bounds
    hi = quant_max - z
    # TODO(synk): alias x -> y (input_output_aliases) when the caller can donate
    # the activation, to halve the HBM footprint of the quantization pass.
    if Q == 1:
        # channel on lanes: same kernel, params presented as (1, C) rows
        x2d = x.reshape(P, C)
        pt, cb = _pick_tiles(P, C, itemsize)
        grid = (pl.cdiv(P, pt), pl.cdiv(C, cb))
        ch = pl.BlockSpec((1, cb), lambda i, c: (0, c))
        y = pl.pallas_call(
            _fq_affine_kernel,
            out_shape=jax.ShapeDtypeStruct((P, C), x.dtype),
            grid=grid,
            in_specs=[pl.BlockSpec((pt, cb), lambda i, c: (i, c)), ch, ch, ch, ch],
            out_specs=pl.BlockSpec((pt, cb), lambda i, c: (i, c)),
            compiler_params=_compiler_params(("parallel", "parallel")),
        )(x2d, s.reshape(1, C), inv.reshape(1, C), lo.reshape(1, C), hi.reshape(1, C))
        return y.reshape(x.shape)
    # channel on sublanes: params presented as (C, 1) columns
    x3d = x.reshape(P, C, Q)
    cb, qb = _pick_tiles(C, Q, itemsize)
    grid = (P, pl.cdiv(C, cb), pl.cdiv(Q, qb))
    ch = pl.BlockSpec((cb, 1), lambda p, c, q: (c, 0))
    y = pl.pallas_call(
        _fq_affine_kernel,
        out_shape=jax.ShapeDtypeStruct((P, C, Q), x.dtype),
        grid=grid,
        in_specs=[pl.BlockSpec((None, cb, qb), lambda p, c, q: (p, c, q)),
                  ch, ch, ch, ch],
        out_specs=pl.BlockSpec((None, cb, qb), lambda p, c, q: (p, c, q)),
        compiler_params=_compiler_params(("parallel", "parallel", "parallel")),
    )(x3d, s.reshape(C, 1), inv.reshape(C, 1), lo.reshape(C, 1), hi.reshape(C, 1))
    return y.reshape(x.shape)


# ---------------------------------------------------------------------------
# Observer + FakeQuantizer (mirrors the PyTorch module semantics)
# ---------------------------------------------------------------------------
class MinMaxObserver:
    """Affine min/max observer (statistics computed by the Pallas kernels)."""

    def __init__(self, ch_axis=-1, quant_min=-128, quant_max=127):
        self.ch_axis = ch_axis
        self.quant_min = quant_min
        self.quant_max = quant_max

    def _scale_zp(self, min_v, max_v):
        min_v = jnp.minimum(min_v, 0.0)
        max_v = jnp.maximum(max_v, 0.0)
        scale = (max_v - min_v) / float(self.quant_max - self.quant_min)
        scale = jnp.maximum(scale, 1e-8)
        zero_point = self.quant_min - jnp.round(min_v / scale)
        zero_point = jnp.clip(zero_point, self.quant_min, self.quant_max)
        return scale.astype(jnp.float32), zero_point.astype(jnp.float32)

    def __call__(self, x):
        if self.ch_axis == -1:
            return self._scale_zp(*minmax_per_tensor(x))
        return self._scale_zp(*minmax_per_channel(x, self.ch_axis))


class FakeQuantizer:
    """JAX/Pallas port of utils/quantize/fake_quantizer.py::FakeQuantizer."""

    # TODO(synk): scale / zero_point are mutated Python attributes (torch
    # buffers); wrap in a functional interface before jax.jit'ing __call__.
    def __init__(self, observer, mode='calibration'):
        self.observer = observer
        self.ch_axis = observer.ch_axis
        self.scale = jnp.asarray(1.0, jnp.float32)
        self.zero_point = jnp.asarray(0.0, jnp.float32)
        assert mode in ['calibration', 'quantization']
        self.mode = mode

    def __call__(self, x):
        if self.mode == 'calibration':
            if x.size > 0:
                self.scale, self.zero_point = self.observer(x)
        if self.mode == 'quantization':
            if x.size == 0:
                return x
            qmin = self.observer.quant_min
            qmax = self.observer.quant_max
            if self.ch_axis == -1:
                x = fakequant_per_tensor(x, self.scale, self.zero_point, qmin, qmax)
            else:
                x = fakequant_per_channel(x, self.scale, self.zero_point,
                                          self.ch_axis, qmin, qmax)
        return x


# ---------------------------------------------------------------------------
# Pure-JAX reference (same formulation as the kernels)
# ---------------------------------------------------------------------------
def ref_fakequant(x, scale, zero_point, ch_axis, qmin, qmax):
    x32 = x.astype(jnp.float32)
    scale = jnp.asarray(scale, jnp.float32)
    zero_point = jnp.asarray(zero_point, jnp.float32)
    if ch_axis != -1:
        shp = [1] * x.ndim
        shp[ch_axis] = -1
        scale = scale.reshape(shp)
        zero_point = zero_point.reshape(shp)
    q = jnp.clip(jnp.round(x32 * (1.0 / scale)), qmin - zero_point, qmax - zero_point)
    return (scale * q).astype(x.dtype)


def _run_case(x, ch_axis, qmin=-128, qmax=127, tol=1e-5):
    obs = MinMaxObserver(ch_axis=ch_axis, quant_min=qmin, quant_max=qmax)
    fq = FakeQuantizer(obs, mode='calibration')
    y_cal = fq(x)                     # calibration: stats only, x unchanged
    assert y_cal.shape == x.shape
    fq.mode = 'quantization'
    y = jax.block_until_ready(fq(x))
    ref = ref_fakequant(x, fq.scale, fq.zero_point, ch_axis, qmin, qmax)
    np.testing.assert_allclose(np.asarray(y.astype(jnp.float32)),
                               np.asarray(ref.astype(jnp.float32)),
                               rtol=tol, atol=tol)


if __name__ == "__main__":
    key = jax.random.PRNGKey(0)
    k0, k1, k2, k3 = jax.random.split(key, 4)

    # NCHW activation-like tensor
    x = jax.random.normal(k0, (2, 4, 16, 16), dtype=jnp.float32) * 3.0 + 0.5
    _run_case(x, ch_axis=-1)          # per-tensor
    _run_case(x, ch_axis=1)           # per-channel, channel on sublanes
    _run_case(x, ch_axis=0)           # per-channel, leading axis
    _run_case(x, ch_axis=3)           # per-channel, channel on lanes

    # ragged small tensor (numel not a multiple of 128)
    x_odd = jax.random.normal(k1, (3, 5, 7), dtype=jnp.float32) * 2.0 - 0.3
    _run_case(x_odd, ch_axis=-1)
    _run_case(x_odd, ch_axis=0)

    # wide ragged tensor: exercises the in-kernel lane-tail mask / OOB discard
    x_wide = jax.random.normal(k2, (8, 5000), dtype=jnp.float32) * 1.7
    _run_case(x_wide, ch_axis=-1)
    _run_case(x_wide.reshape(1, 8, 5000), ch_axis=1)

    # bf16 input: dtype-aware tile bytes / packed sublane constraints
    x_bf = (jax.random.normal(k3, (2, 4, 16, 16), dtype=jnp.float32) * 3.0
            ).astype(jnp.bfloat16)
    _run_case(x_bf, ch_axis=-1, tol=2e-2)
    _run_case(x_bf, ch_axis=1, tol=2e-2)

    print("KERNEL_OK")
</pallas_src>

<mosaic_0001>
module attributes {stable_mosaic.version = 11 : i64} {
  func.func @_minmax_rows_kernel(%arg0: i32, %arg1: i32, %arg2: memref<1x2048xf32, #tpu.memory_space<vmem>>, %arg3: memref<1x1xf32, #tpu.memory_space<vmem>>, %arg4: memref<1x1xf32, #tpu.memory_space<vmem>>) attributes {dimension_semantics = [#tpu.dimension_semantics<parallel>, #tpu.dimension_semantics<arbitrary>], iteration_bounds = array<i64: 1, 1>, scalar_prefetch = 0 : i64, scratch_operands = 0 : i64, tpu.core_type = #tpu.core_type<tc>, window_params = [{transform_indices = @transform_0, window_bounds = array<i64: 1, 2048>}, {transform_indices = @transform_1, window_bounds = array<i64: 1, 1>}, {transform_indices = @transform_2, window_bounds = array<i64: 1, 1>}]} {
    %c0 = arith.constant 0 : index
    %c0_0 = arith.constant 0 : index
    %0 = vector.load %arg2[%c0, %c0_0] : memref<1x2048xf32, #tpu.memory_space<vmem>>, vector<1x2048xf32>
    %cst = arith.constant dense<0x7F800000> : vector<1xf32>
    %1 = vector.multi_reduction <minimumf>, %0, %cst [1] : vector<1x2048xf32> to vector<1xf32>
    %2 = vector.shape_cast %1 : vector<1xf32> to vector<1x1xf32>
    %cst_1 = arith.constant dense<0xFF800000> : vector<1xf32>
    %3 = vector.multi_reduction <maximumf>, %0, %cst_1 [1] : vector<1x2048xf32> to vector<1xf32>
    %4 = vector.shape_cast %3 : vector<1xf32> to vector<1x1xf32>
    %c0_i32 = arith.constant 0 : i32
    %5 = arith.cmpi eq, %arg1, %c0_i32 : i32
    %6 = arith.extui %5 : i1 to i32
    %c0_i32_2 = arith.constant 0 : i32
    %7 = arith.cmpi ne, %6, %c0_i32_2 : i32
    scf.if %7 {
      %c0_5 = arith.constant 0 : index
      %c0_6 = arith.constant 0 : index
      %11 = vector.load %arg3[%c0_5, %c0_6] : memref<1x1xf32, #tpu.memory_space<vmem>>, vector<1x1xf32>
      tpu.vector_store %arg3[%c0_5, %c0_6], %2 {strides = array<i32>} : memref<1x1xf32, #tpu.memory_space<vmem>>, vector<1x1xf32>,
      %c0_7 = arith.constant 0 : index
      %c0_8 = arith.constant 0 : index
      %12 = vector.load %arg4[%c0_7, %c0_8] : memref<1x1xf32, #tpu.memory_space<vmem>>, vector<1x1xf32>
      tpu.vector_store %arg4[%c0_7, %c0_8], %4 {strides = array<i32>} : memref<1x1xf32, #tpu.memory_space<vmem>>, vector<1x1xf32>,
    } else {
    }
    %c0_i32_3 = arith.constant 0 : i32
    %8 = arith.cmpi ne, %arg1, %c0_i32_3 : i32
    %9 = arith.extui %8 : i1 to i32
    %c0_i32_4 = arith.constant 0 : i32
    %10 = arith.cmpi ne, %9, %c0_i32_4 : i32
    scf.if %10 {
      %c0_5 = arith.constant 0 : index
      %c0_6 = arith.constant 0 : index
      %11 = vector.load %arg3[%c0_5, %c0_6] : memref<1x1xf32, #tpu.memory_space<vmem>>, vector<1x1xf32>
      %12 = arith.minimumf %11, %2 : vector<1x1xf32>
      %c0_7 = arith.constant 0 : index
      %c0_8 = arith.constant 0 : index
      %13 = vector.load %arg3[%c0_7, %c0_8] : memref<1x1xf32, #tpu.memory_space<vmem>>, vector<1x1xf32>
      tpu.vector_store %arg3[%c0_7, %c0_8], %12 {strides = array<i32>} : memref<1x1xf32, #tpu.memory_space<vmem>>, vector<1x1xf32>,
      %c0_9 = arith.constant 0 : index
      %c0_10 = arith.constant 0 : index
      %14 = vector.load %arg4[%c0_9, %c0_10] : memref<1x1xf32, #tpu.memory_space<vmem>>, vector<1x1xf32>
      %15 = arith.maximumf %14, %4 : vector<1x1xf32>
      %c0_11 = arith.constant 0 : index
      %c0_12 = arith.constant 0 : index
      %16 = vector.load %arg4[%c0_11, %c0_12] : memref<1x1xf32, #tpu.memory_space<vmem>>, vector<1x1xf32>
      tpu.vector_store %arg4[%c0_11, %c0_12], %15 {strides = array<i32>} : memref<1x1xf32, #tpu.memory_space<vmem>>, vector<1x1xf32>,
    } else {
    }
    return
  }
  func.func @transform_0(%arg0: i32, %arg1: i32) -> (i32, i32) {
    %c0_i32 = arith.constant 0 : i32
    return %arg0, %arg1 : i32, i32
  }
  func.func @transform_1(%arg0: i32, %arg1: i32) -> (i32, i32) {
    %c0_i32 = arith.constant 0 : i32
    %c0_i32_0 = arith.constant 0 : i32
    return %arg0, %c0_i32 : i32, i32
  }
  func.func @transform_2(%arg0: i32, %arg1: i32) -> (i32, i32) {
    %c0_i32 = arith.constant 0 : i32
    %c0_i32_0 = arith.constant 0 : i32
    return %arg0, %c0_i32 : i32, i32
  }
}

</mosaic_0001>

<llo_original>
// kernel: tpu_custom_call.1
$region0: #{tpu_custom_call.1}
  #allocation0 [shape = 'u32[]', space=smem, size = 0x4, offset = 0x4, fixed_abs, tag = 'smem constant byte address 0x4 - core index']
  #allocation1 [shape = 'u32[144,128]{1,0:T(1,128)}', space=vmem, size = 0x12000, scoped, tag = 'internal scratch']
  %s0 = inlined_call_operand.hbm [shape: f32[1,2048], index: 0, kind: input, shape index: {}]
  %s1 = inlined_call_operand.hbm [shape: f32[1,1], index: 1, kind: output, shape index: {0}]
  %s2 = inlined_call_operand.hbm [shape: f32[1,1], index: 2, kind: output, shape index: {1}]
  %3 = xla_tuple %s1, %s2
  %s4 = sld [smem:[#allocation0]]
  $region34: #{tpu_custom_call.1} parent=0
    _
  %s6 = ssub.s32 1, %s4
  %s7 = scalar_select 0, %s6, %s4
  $region1: #{tpu_custom_call.1} parent=0
    #allocation2 [shape = 'u8[8192]{0}', space=vmem, size = 0x2000, scoped, tag = 'input window, operand 0, single buffered']
    #allocation3 [shape = 's32[1]{0}', space=sflag, size = 0x4, scoped, tag = 'scoped memory for tpu_custom_call.1']
    #allocation4 [shape = 's32[1]{0}', space=sflag, size = 0x4, scoped, tag = 'scoped memory for tpu_custom_call.1']
    #allocation5 [shape = 'u8[512]{0}', space=vmem, size = 0x400, scoped, tag = 'output window, operand 0, single buffered']
    #allocation6 [shape = 'u8[512]{0}', space=vmem, size = 0x400, scoped, tag = 'output window, operand 1, single buffered']
    #allocation7 [shape = 's32[1]{0}', space=sflag, size = 0x4, scoped, tag = 'scoped memory for tpu_custom_call.1']
    %8 = vsyncpa [#allocation3], 0
    %9 = vsyncpa [#allocation4], 0
    %10 = vsyncpa [#allocation7], 0
    // Predicated region
    $region2: #{tpu_custom_call.1} parent=1 // pred_check
      _
    $region3: #{tpu_custom_call.1} parent=1 // pred_check_branch
      %12 = sbr.rel (0) target = $region5
    $region4: #{tpu_custom_call.1} parent=1 // pred_region
      %s14 = ssub.s32 256, 256
      %15 = vsyncadd [#allocation3], %s14
      %s17 = sshll.u32 [#allocation2], 4
      %s18 = int_to_ptr.vmem [resolvable:$true] %s17
      %20 = dma.hbm_to_vmem [thread:$0]  %s0, 256, %s18, [#allocation3]
    $region5: #{tpu_custom_call.1} parent=1 // pred_fallthru
      _
    // Predicated region
    $region6: #{tpu_custom_call.1} parent=1 // pred_check
      _
    $region7: #{tpu_custom_call.1} parent=1 // pred_check_branch
      %22 = sbr.rel (0) target = $region9
    $region8: #{tpu_custom_call.1} parent=1 // pred_region
      %23 = dma.done [#allocation3], 256
    $region9: #{tpu_custom_call.1} parent=1 // pred_fallthru
      _
    %v24 = vld [vmem:[#allocation2] sm:$0xff]
    %v25 = vld [vmem:[#allocation2 + $0x8] sm:$0xff]
    %v28 = vlaneseq
    %v29 = vshrl.u32 %v28, 7
    %v30 = vsub.s32 0, %v29
    %v31 = vrot.slane %v24, %v30
    %v32 = vlaneseq
    %v33 = vshrl.u32 %v32, 7
    %v34 = vsub.s32 1, %v33
    %v35 = vrot.slane %v24, %v34
    %v36 = vlaneseq
    %v37 = vshrl.u32 %v36, 7
    %v38 = vsub.s32 2, %v37
    %v39 = vrot.slane %v24, %v38
    %v40 = vlaneseq
    %v41 = vshrl.u32 %v40, 7
    %v42 = vsub.s32 3, %v41
    %v43 = vrot.slane %v24, %v42
    %v44 = vlaneseq
    %v45 = vshrl.u32 %v44, 7
    %v46 = vsub.s32 4, %v45
    %v47 = vrot.slane %v24, %v46
    %v48 = vlaneseq
    %v49 = vshrl.u32 %v48, 7
    %v50 = vsub.s32 5, %v49
    %v51 = vrot.slane %v24, %v50
    %v52 = vlaneseq
    %v53 = vshrl.u32 %v52, 7
    %v54 = vsub.s32 6, %v53
    %v55 = vrot.slane %v24, %v54
    %v56 = vlaneseq
    %v57 = vshrl.u32 %v56, 7
    %v58 = vsub.s32 7, %v57
    %v59 = vrot.slane %v24, %v58
    %v60 = vlaneseq
    %v61 = vshrl.u32 %v60, 7
    %v62 = vsub.s32 0, %v61
    %v63 = vrot.slane %v25, %v62
    %v64 = vlaneseq
    %v65 = vshrl.u32 %v64, 7
    %v66 = vsub.s32 1, %v65
    %v67 = vrot.slane %v25, %v66
    %v68 = vlaneseq
    %v69 = vshrl.u32 %v68, 7
    %v70 = vsub.s32 2, %v69
    %v71 = vrot.slane %v25, %v70
    %v72 = vlaneseq
    %v73 = vshrl.u32 %v72, 7
    %v74 = vsub.s32 3, %v73
    %v75 = vrot.slane %v25, %v74
    %v76 = vlaneseq
    %v77 = vshrl.u32 %v76, 7
    %v78 = vsub.s32 4, %v77
    %v79 = vrot.slane %v25, %v78
    %v80 = vlaneseq
    %v81 = vshrl.u32 %v80, 7
    %v82 = vsub.s32 5, %v81
    %v83 = vrot.slane %v25, %v82
    %v84 = vlaneseq
    %v85 = vshrl.u32 %v84, 7
    %v86 = vsub.s32 6, %v85
    %v87 = vrot.slane %v25, %v86
    %v88 = vlaneseq
    %v89 = vshrl.u32 %v88, 7
    %v90 = vsub.s32 7, %v89
    %v91 = vrot.slane %v25, %v90
    %vm108 = vcmask 1040384
    %v109 = vsel %vm108, %v31, inf
    %v110 = vsel %vm108, %v35, inf
    %v111 = vsel %vm108, %v39, inf
    %v112 = vsel %vm108, %v43, inf
    %v113 = vsel %vm108, %v47, inf
    %v114 = vmin.f32 %v109, %v113
    %v115 = vsel %vm108, %v51, inf
    %v116 = vmin.f32 %v110, %v115
    %v117 = vsel %vm108, %v55, inf
    %v118 = vmin.f32 %v111, %v117
    %v119 = vsel %vm108, %v59, inf
    %v120 = vmin.f32 %v112, %v119
    %v121 = vsel %vm108, %v63, inf
    %v122 = vmin.f32 %v114, %v121
    %v123 = vsel %vm108, %v67, inf
    %v124 = vmin.f32 %v116, %v123
    %v125 = vsel %vm108, %v71, inf
    %v126 = vmin.f32 %v118, %v125
    %v127 = vsel %vm108, %v75, inf
    %v128 = vmin.f32 %v120, %v127
    %v129 = vsel %vm108, %v79, inf
    %v130 = vmin.f32 %v122, %v129
    %v131 = vsel %vm108, %v83, inf
    %v132 = vmin.f32 %v124, %v131
    %v133 = vsel %vm108, %v87, inf
    %v134 = vmin.f32 %v126, %v133
    %v135 = vsel %vm108, %v91, inf
    %v136 = vmin.f32 %v128, %v135
    %v137 = vmin.f32 %v130, %v132
    %v138 = vmin.f32 %v134, %v136
    %v139 = vmin.f32 %v137, %v138
    %140 = vmin.xlane.f32.xlu0 %v139
    %v141 = vpop.xlane.xlu0 %140
    %v142 = vsel %vm108, %v31, -inf
    %v143 = vsel %vm108, %v35, -inf
    %v144 = vsel %vm108, %v39, -inf
    %v145 = vsel %vm108, %v43, -inf
    %v146 = vsel %vm108, %v47, -inf
    %v147 = vmax.f32 %v142, %v146
    %v148 = vsel %vm108, %v51, -inf
    %v149 = vmax.f32 %v143, %v148
    %v150 = vsel %vm108, %v55, -inf
    %v151 = vmax.f32 %v144, %v150
    %v152 = vsel %vm108, %v59, -inf
    %v153 = vmax.f32 %v145, %v152
    %v154 = vsel %vm108, %v63, -inf
    %v155 = vmax.f32 %v147, %v154
    %v156 = vsel %vm108, %v67, -inf
    %v157 = vmax.f32 %v149, %v156
    %v158 = vsel %vm108, %v71, -inf
    %v159 = vmax.f32 %v151, %v158
    %v160 = vsel %vm108, %v75, -inf
    %v161 = vmax.f32 %v153, %v160
    %v162 = vsel %vm108, %v79, -inf
    %v163 = vmax.f32 %v155, %v162
    %v164 = vsel %vm108, %v83, -inf
    %v165 = vmax.f32 %v157, %v164
    %v166 = vsel %vm108, %v87, -inf
    %v167 = vmax.f32 %v159, %v166
    %v168 = vsel %vm108, %v91, -inf
    %v169 = vmax.f32 %v161, %v168
    %v170 = vmax.f32 %v163, %v165
    %v171 = vmax.f32 %v167, %v169
    %v172 = vmax.f32 %v170, %v171
    %173 = vmax.xlane.f32.xlu0 %v172
    %v174 = vpop.xlane.xlu0 %173
    %p175 = scmp.eq.s32.totalorder 0, 0
    // Predicated region
    $region10: #{tpu_custom_call.1} parent=1 // pred_check
      %p176 = pneg %p175
    $region11: #{tpu_custom_call.1} parent=1 // pred_check_branch
      %178 = sbr.rel (%p176) target = $region13
    $region12: #{tpu_custom_call.1} parent=1 // pred_region
      %vm179 = vcmask 0
      %180 = vst.msk [vmem:[#allocation5] sm:$0x1] %vm179, %v141
      %181 = vst.msk [vmem:[#allocation6] sm:$0x1] %vm179, %v174
    $region13: #{tpu_custom_call.1} parent=1 // pred_fallthru
      _
    %p182 = scmp.ne.s32.totalorder 0, 0
    // Predicated region
    $region14: #{tpu_custom_call.1} parent=1 // pred_check
      %p183 = pneg %p182
    $region15: #{tpu_custom_call.1} parent=1 // pred_check_branch
      %185 = sbr.rel (%p183) target = $region17
    $region16: #{tpu_custom_call.1} parent=1 // pred_region
      %v186 = vld [vmem:[#allocation5] sm:$0x1]
      %v187 = vmin.f32 %v186, %v141
      %vm188 = vcmask 0
      %189 = vst.msk [vmem:[#allocation5] sm:$0x1] %vm188, %v187
      %v190 = vld [vmem:[#allocation6] sm:$0x1]
      %v191 = vmax.f32 %v190, %v174
      %192 = vst.msk [vmem:[#allocation6] sm:$0x1] %vm188, %v191
    $region17: #{tpu_custom_call.1} parent=1 // pred_fallthru
      _
    // Predicated region
    $region18: #{tpu_custom_call.1} parent=1 // pred_check
      _
    $region19: #{tpu_custom_call.1} parent=1 // pred_check_branch
      %194 = sbr.rel (0) target = $region21
    $region20: #{tpu_custom_call.1} parent=1 // pred_region
      %s196 = ssub.s32 16, 16
      %197 = vsyncadd [#allocation4], %s196
      %s199 = sshll.u32 [#allocation5], 4
      %s200 = int_to_ptr.vmem [resolvable:$true] %s199
      %202 = dma.vmem_to_hbm [thread:$0]  %s200, 16, %s1, [#allocation4]
    $region21: #{tpu_custom_call.1} parent=1 // pred_fallthru
      _
    // Predicated region
    $region22: #{tpu_custom_call.1} parent=1 // pred_check
      _
    $region23: #{tpu_custom_call.1} parent=1 // pred_check_branch
      %204 = sbr.rel (0) target = $region25
    $region24: #{tpu_custom_call.1} parent=1 // pred_region
      %s206 = ssub.s32 16, 16
      %207 = vsyncadd [#allocation7], %s206
      %s209 = sshll.u32 [#allocation6], 4
      %s210 = int_to_ptr.vmem [resolvable:$true] %s209
      %212 = dma.vmem_to_hbm [thread:$0]  %s210, 16, %s2, [#allocation7]
    $region25: #{tpu_custom_call.1} parent=1 // pred_fallthru
      _
    // Predicated region
    $region26: #{tpu_custom_call.1} parent=1 // pred_check
      _
    $region27: #{tpu_custom_call.1} parent=1 // pred_check_branch
      %214 = sbr.rel (0) target = $region29
    $region28: #{tpu_custom_call.1} parent=1 // pred_region
      %215 = dma.done [#allocation4], 16
    $region29: #{tpu_custom_call.1} parent=1 // pred_fallthru
      _
    // Predicated region
    $region30: #{tpu_custom_call.1} parent=1 // pred_check
      _
    $region31: #{tpu_custom_call.1} parent=1 // pred_check_branch
      %217 = sbr.rel (0) target = $region33
    $region32: #{tpu_custom_call.1} parent=1 // pred_region
      %218 = dma.done [#allocation7], 16
    $region33: #{tpu_custom_call.1} parent=1 // pred_fallthru
      _
    %219 = vsyncpa [#allocation3], 1
    %220 = vsyncpa [#allocation4], 1
    %221 = vsyncpa [#allocation7], 1

</llo_original>
